<compile_context>
chip_gen: v6e
topology: v6e:2x2x1
jax: 0.10.0
libtpu: 0.0.40
codegen_flags: <defaults>
</compile_context>

<pallas_src>
import jax
import jax.numpy as jnp
from jax.experimental import pallas as pl
from jax.experimental.pallas import tpu as pltpu


def _make_kernel(mxu_dtype, approx_recip):
    def kernel(
        x_ref,      # (1, C, tq)  modality-x tile (query source + residual)
        y_ref,      # (1, C, tk)  modality-y tile (key/value source)
        mt_ref,     # (C, C)      (Wq^T Wk)^T = Wk^T Wq   (folded Q/K weights)
        cb_ref,     # (C, 1)      Wk^T bq   (key-side bias column)
        wv_ref,     # (C, C)      value_conv weight
        bv_ref,     # (C, 1)      value_conv bias
        gamma_ref,  # (1, 1)      scalar gamma (SMEM)
        o_ref,      # (1, C, tq)
        xm_scr,     # (C, tq)     folded query projection (mxu_dtype)
        m_scr,      # (1, tq)     running max (f32)
        l_scr,      # (1, tq)     running denominator (f32)
        acc_scr,    # (C, tq)     running numerator (f32)
    ):
        ki = pl.program_id(2)
        x = x_ref[0]                                     # (C, tq) f32
        y = y_ref[0]                                     # (C, tk) f32

        @pl.when(ki == 0)
        def _init():
            # xm[c, i] = sum_c' Mt[c, c'] * x[c', i] + cb[c]
            xm = jnp.dot(mt_ref[...], x, preferred_element_type=jnp.float32)
            xm = xm + cb_ref[...]
            xm_scr[...] = xm.astype(mxu_dtype)
            m_scr[...] = jnp.full(m_scr.shape, -jnp.inf, dtype=m_scr.dtype)
            l_scr[...] = jnp.zeros(l_scr.shape, dtype=l_scr.dtype)
            acc_scr[...] = jnp.zeros(acc_scr.shape, dtype=acc_scr.dtype)

        # Scores, key-major: s[j, i] = sum_c y[c, j] * xm[c, i]  -> (tk, tq).
        # dot_general absorbs the transpose into MXU operand staging; no k.T.
        s = jax.lax.dot_general(
            y.astype(mxu_dtype), xm_scr[...],
            dimension_numbers=(((0,), (0,)), ((), ())),
            preferred_element_type=jnp.float32)           # (tk, tq) f32

        # Online softmax over the key axis (axis 0 here), f32 statistics.
        m_prev = m_scr[...]                               # (1, tq)
        m_new = jnp.maximum(m_prev, jnp.max(s, axis=0, keepdims=True))
        alpha = jnp.exp(m_prev - m_new)                   # (1, tq)
        p = jnp.exp(s - m_new)                            # (tk, tq) f32
        l_scr[...] = alpha * l_scr[...] + jnp.sum(p, axis=0, keepdims=True)
        m_scr[...] = m_new

        # Value tile: v[c, j] = sum_c' Wv[c, c'] * y[c', j] + bv[c]  -> (C, tk)
        v = jnp.dot(wv_ref[...], y, preferred_element_type=jnp.float32)
        v = v + bv_ref[...]

        # acc[c, i] += sum_j v[c, j] * p[j, i]
        pv = jnp.dot(v.astype(mxu_dtype), p.astype(mxu_dtype),
                     preferred_element_type=jnp.float32)  # (C, tq)
        acc_scr[...] = alpha * acc_scr[...] + pv

        @pl.when(ki == pl.num_programs(2) - 1)
        def _finish():
            inv_l = pl.reciprocal(l_scr[...], approx=approx_recip)  # (1, tq)
            out = acc_scr[...] * inv_l                              # (C, tq)
            o_ref[0] = (gamma_ref[0, 0] * out + x).astype(o_ref.dtype)

    return kernel


def cross_modal_attention(x_nchw, y_nchw, params, *, tq=None, tk=None, fast=True):
    """x_nchw, y_nchw: (B, C, W, H) float32.  Returns (B, C, W, H).

    fast=True  -> bf16 MXU operands + approx (EUP) reciprocal.
    fast=False -> f32 MXU operands + exact reciprocal (reference-accurate).
    """
    B, C, W, H = x_nchw.shape
    N = W * H

    # NCHW -> (B, C, N): a pure reshape (matches torch .view), no transpose.
    x_bcn = x_nchw.reshape(B, C, N)
    y_bcn = y_nchw.reshape(B, C, N)

    # Default tile sizes: biggest lane-aligned tile up to 256 (v6e/v7x MXU width).
    if tq is None:
        tq = N if N <= 256 else 256
    if tk is None:
        tk = N if N <= 256 else 256
    assert N % tq == 0 and N % tk == 0, "W*H must be divisible by the tile sizes"
    assert N % 128 == 0, "W*H must be a multiple of 128 for lane-dense tiles"
    assert C % 8 == 0, "channels must be a multiple of 8 (sublane tiling)"

    wq, bq = params["wq"], params["bq"]        # (C8, C), (C8,)
    wk = params["wk"]                          # (C8, C)  (bk cancels under softmax)
    wv, bv = params["wv"], params["bv"]        # (C, C), (C,)

    # Fold Q/K projections (see header comment).
    mt = (wk.T @ wq).astype(jnp.float32)                 # (C, C)  == (Wq^T Wk)^T
    cb = (wk.T @ bq).reshape(C, 1).astype(jnp.float32)   # (C, 1)
    bv_col = bv.reshape(C, 1).astype(jnp.float32)
    gamma = params["gamma"].reshape(1, 1).astype(jnp.float32)

    mxu_dtype = jnp.bfloat16 if fast else jnp.float32
    kernel = _make_kernel(mxu_dtype, approx_recip=fast)

    # Explicit VMEM budget from the tile footprint (double-buffered blocks,
    # scratch, score/prob temporaries), clamped to the v7x scoped limit.
    f32 = 4
    mxu_bytes = 2 if fast else 4
    tile_bytes = (
        2 * f32 * C * (tq + tk + tq)                 # x / y / out blocks, 2x buffered
        + f32 * (2 * C * C + 2 * C)                  # weights + bias columns
        + mxu_bytes * C * tq + f32 * C * tq          # xm + acc scratch
        + 2 * f32 * 8 * tq                           # m / l scratch (padded sublanes)
        + 4 * f32 * tk * tq                          # s, p and compiler temporaries
    )
    vmem_limit = int(min(max(4 * tile_bytes, 16 << 20), 32 << 20))

    out_bcn = pl.pallas_call(
        kernel,
        out_shape=jax.ShapeDtypeStruct((B, C, N), jnp.float32),
        grid_spec=pltpu.PrefetchScalarGridSpec(
            num_scalar_prefetch=0,
            grid=(B, N // tq, N // tk),
            in_specs=[
                pl.BlockSpec((1, C, tq), lambda b, qi, ki: (b, 0, qi)),   # x
                pl.BlockSpec((1, C, tk), lambda b, qi, ki: (b, 0, ki)),   # y
                pl.BlockSpec((C, C), lambda b, qi, ki: (0, 0)),           # Mt (resident)
                pl.BlockSpec((C, 1), lambda b, qi, ki: (0, 0)),           # cb
                pl.BlockSpec((C, C), lambda b, qi, ki: (0, 0)),           # Wv (resident)
                pl.BlockSpec((C, 1), lambda b, qi, ki: (0, 0)),           # bv
                pl.BlockSpec(memory_space=pltpu.SMEM),                    # gamma
            ],
            out_specs=pl.BlockSpec((1, C, tq), lambda b, qi, ki: (b, 0, qi)),
            scratch_shapes=[
                pltpu.VMEM((C, tq), mxu_dtype),    # xm (folded query projection)
                pltpu.VMEM((1, tq), jnp.float32),  # m (running max)
                pltpu.VMEM((1, tq), jnp.float32),  # l (running denominator)
                pltpu.VMEM((C, tq), jnp.float32),  # acc (running numerator)
            ],
        ),
        compiler_params=pltpu.CompilerParams(
            dimension_semantics=("parallel", "parallel", "arbitrary"),
            vmem_limit_bytes=vmem_limit,
        ),
    )(x_bcn, y_bcn, mt, cb, wv, bv_col, gamma)

    # (B, C, N) -> NCHW: pure reshape again, no transpose.
    return out_bcn.reshape(B, C, W, H)


def reference_cross_modal_attention(x, y, params):
    """Pure-JAX reference mirroring the PyTorch forward, for verification."""
    B, C, W, H = x.shape
    N = W * H
    q = jnp.einsum("bcn,oc->bon", x.reshape(B, C, N), params["wq"]) + params["bq"][None, :, None]
    k = jnp.einsum("bcn,oc->bon", y.reshape(B, C, N), params["wk"]) + params["bk"][None, :, None]
    v = jnp.einsum("bcn,oc->bon", y.reshape(B, C, N), params["wv"]) + params["bv"][None, :, None]
    energy = jnp.einsum("bci,bcj->bij", q, k)              # bmm(q^T, k)
    attn = jax.nn.softmax(energy, axis=-1)
    out = jnp.einsum("bcj,bij->bci", v, attn)              # bmm(v, attn^T)
    out = out.reshape(B, C, W, H)
    return params["gamma"][0] * out + x


def make_params(key, C):
    """Deterministic synthetic init matching nn.Conv2d(C, C//8 or C, 1) shapes."""
    C8 = C // 8
    ks = jax.random.split(key, 7)
    params = {
        "wq": jax.random.normal(ks[0], (C8, C), jnp.float32) * 0.1,
        "bq": jax.random.normal(ks[1], (C8,), jnp.float32) * 0.1,
        "wk": jax.random.normal(ks[2], (C8, C), jnp.float32) * 0.1,
        "bk": jax.random.normal(ks[3], (C8,), jnp.float32) * 0.1,
        "wv": jax.random.normal(ks[4], (C, C), jnp.float32) * 0.1,
        "bv": jax.random.normal(ks[5], (C,), jnp.float32) * 0.1,
        # nn.Parameter(torch.zeros(1)) -> gamma; use a nonzero deterministic
        # value so the attention path is actually exercised in the test.
        "gamma": jnp.array([0.5], jnp.float32),
    }
    return params


if __name__ == "__main__":
    B, C, W, H = 2, 32, 16, 16   # N = W*H = 256; C must be >= 8 so C // 8 >= 1
    key = jax.random.PRNGKey(0)
    kx, ky, kp = jax.random.split(key, 3)
    x = jax.random.normal(kx, (B, C, W, H), jnp.float32)
    y = jax.random.normal(ky, (B, C, W, H), jnp.float32)
    params = make_params(kp, C)

    ref = reference_cross_modal_attention(x, y, params)

    # Precise path (f32 MXU, exact reciprocal), tq=tk=128 so the online-softmax
    # accumulation across key tiles is actually exercised (2 key steps).
    out_precise = jax.block_until_ready(
        cross_modal_attention(x, y, params, tq=128, tk=128, fast=False))
    assert out_precise.shape == (B, C, W, H)
    assert jnp.allclose(out_precise, ref, atol=1e-4, rtol=1e-4), (
        f"precise path: max abs err = {jnp.max(jnp.abs(out_precise - ref))}")

    # Fast path (bf16 MXU operands, f32 accumulation, approx reciprocal).
    # Tolerance sized for bf16 operand rounding; the f32 path above is the
    # strict correctness check.
    out_fast = jax.block_until_ready(cross_modal_attention(x, y, params, fast=True))
    assert out_fast.shape == (B, C, W, H)
    assert jnp.allclose(out_fast, ref, atol=5e-3, rtol=5e-3), (
        f"fast path: max abs err = {jnp.max(jnp.abs(out_fast - ref))}")

    print("KERNEL_OK")
</pallas_src>

<mosaic_0001>
module attributes {stable_mosaic.version = 11 : i64} {
  func.func @kernel(%arg0: i32, %arg1: i32, %arg2: i32, %arg3: memref<1x32x128xf32, #tpu.memory_space<vmem>>, %arg4: memref<1x32x128xf32, #tpu.memory_space<vmem>>, %arg5: memref<32x32xf32, #tpu.memory_space<vmem>>, %arg6: memref<32x1xf32, #tpu.memory_space<vmem>>, %arg7: memref<32x32xf32, #tpu.memory_space<vmem>>, %arg8: memref<32x1xf32, #tpu.memory_space<vmem>>, %arg9: memref<1x1xf32, #tpu.memory_space<smem>>, %arg10: memref<1x32x128xf32, #tpu.memory_space<vmem>>, %arg11: memref<32x128xf32, #tpu.memory_space<vmem>>, %arg12: memref<1x128xf32, #tpu.memory_space<vmem>>, %arg13: memref<1x128xf32, #tpu.memory_space<vmem>>, %arg14: memref<32x128xf32, #tpu.memory_space<vmem>>) attributes {dimension_semantics = [#tpu.dimension_semantics<parallel>, #tpu.dimension_semantics<parallel>, #tpu.dimension_semantics<arbitrary>], iteration_bounds = array<i64: 2, 2, 2>, scalar_prefetch = 0 : i64, scratch_operands = 4 : i64, tpu.core_type = #tpu.core_type<tc>, window_params = [{transform_indices = @transform_0, window_bounds = array<i64: 1, 32, 128>}, {transform_indices = @transform_1, window_bounds = array<i64: 1, 32, 128>}, {pipeline_mode = #tpu.pipeline_mode<synchronous>, transform_indices = @transform_2, window_bounds = array<i64: 32, 32>}, {pipeline_mode = #tpu.pipeline_mode<synchronous>, transform_indices = @transform_3, window_bounds = array<i64: 32, 1>}, {pipeline_mode = #tpu.pipeline_mode<synchronous>, transform_indices = @transform_4, window_bounds = array<i64: 32, 32>}, {pipeline_mode = #tpu.pipeline_mode<synchronous>, transform_indices = @transform_5, window_bounds = array<i64: 32, 1>}, {transform_indices = @transform_6, window_bounds = array<i64: 1, 1>}, {transform_indices = @transform_7, window_bounds = array<i64: 1, 32, 128>}]} {
    %c0 = arith.constant 0 : index
    %c0_0 = arith.constant 0 : index
    %c0_1 = arith.constant 0 : index
    %0 = vector.load %arg3[%c0, %c0_0, %c0_1] : memref<1x32x128xf32, #tpu.memory_space<vmem>>, vector<1x32x128xf32>
    %1 = vector.shape_cast %0 : vector<1x32x128xf32> to vector<32x128xf32>
    %c0_2 = arith.constant 0 : index
    %c0_3 = arith.constant 0 : index
    %c0_4 = arith.constant 0 : index
    %2 = vector.load %arg4[%c0_2, %c0_3, %c0_4] : memref<1x32x128xf32, #tpu.memory_space<vmem>>, vector<1x32x128xf32>
    %3 = vector.shape_cast %2 : vector<1x32x128xf32> to vector<32x128xf32>
    %c0_i32 = arith.constant 0 : i32
    %4 = arith.cmpi eq, %arg2, %c0_i32 : i32
    %5 = arith.extui %4 : i1 to i32
    %c0_i32_5 = arith.constant 0 : i32
    %6 = arith.cmpi ne, %5, %c0_i32_5 : i32
    scf.if %6 {
      %c0_29 = arith.constant 0 : index
      %c0_30 = arith.constant 0 : index
      %39 = vector.load %arg5[%c0_29, %c0_30] : memref<32x32xf32, #tpu.memory_space<vmem>>, vector<32x32xf32>
      %cst_31 = arith.constant dense<0.000000e+00> : vector<32x128xf32>
      %40 = tpu.matmul %39, %1, %cst_31 {dimension_numbers = #tpu.dot_dimension_numbers<[1], [0], [0], [1], [0, 0, 1, 1], [], []>} : vector<32x32xf32>, vector<32x128xf32>, vector<32x128xf32> -> vector<32x128xf32>
      %c0_32 = arith.constant 0 : index
      %c0_33 = arith.constant 0 : index
      %41 = vector.load %arg6[%c0_32, %c0_33] : memref<32x1xf32, #tpu.memory_space<vmem>>, vector<32x1xf32>
      %42 = vector.broadcast %41 : vector<32x1xf32> to vector<32x128xf32>
      %43 = arith.addf %40, %42 : vector<32x128xf32>
      %c0_34 = arith.constant 0 : index
      %c0_35 = arith.constant 0 : index
      %44 = vector.load %arg11[%c0_34, %c0_35] : memref<32x128xf32, #tpu.memory_space<vmem>>, vector<32x128xf32>
      tpu.vector_store %arg11[%c0_34, %c0_35], %43 {strides = array<i32>} : memref<32x128xf32, #tpu.memory_space<vmem>>, vector<32x128xf32>,
      %cst_36 = arith.constant 0xFF800000 : f32
      %45 = vector.broadcast %cst_36 : f32 to vector<1x128xf32>
      %c0_37 = arith.constant 0 : index
      %c0_38 = arith.constant 0 : index
      %46 = vector.load %arg12[%c0_37, %c0_38] : memref<1x128xf32, #tpu.memory_space<vmem>>, vector<1x128xf32>
      tpu.vector_store %arg12[%c0_37, %c0_38], %45 {strides = array<i32>} : memref<1x128xf32, #tpu.memory_space<vmem>>, vector<1x128xf32>,
      %cst_39 = arith.constant 0.000000e+00 : f32
      %47 = vector.broadcast %cst_39 : f32 to vector<1x128xf32>
      %c0_40 = arith.constant 0 : index
      %c0_41 = arith.constant 0 : index
      %48 = vector.load %arg13[%c0_40, %c0_41] : memref<1x128xf32, #tpu.memory_space<vmem>>, vector<1x128xf32>
      tpu.vector_store %arg13[%c0_40, %c0_41], %47 {strides = array<i32>} : memref<1x128xf32, #tpu.memory_space<vmem>>, vector<1x128xf32>,
      %cst_42 = arith.constant 0.000000e+00 : f32
      %49 = vector.broadcast %cst_42 : f32 to vector<32x128xf32>
      %c0_43 = arith.constant 0 : index
      %c0_44 = arith.constant 0 : index
      %50 = vector.load %arg14[%c0_43, %c0_44] : memref<32x128xf32, #tpu.memory_space<vmem>>, vector<32x128xf32>
      tpu.vector_store %arg14[%c0_43, %c0_44], %49 {strides = array<i32>} : memref<32x128xf32, #tpu.memory_space<vmem>>, vector<32x128xf32>,
    } else {
    }
    %c0_6 = arith.constant 0 : index
    %c0_7 = arith.constant 0 : index
    %7 = vector.load %arg11[%c0_6, %c0_7] : memref<32x128xf32, #tpu.memory_space<vmem>>, vector<32x128xf32>
    %cst = arith.constant dense<0.000000e+00> : vector<128x128xf32>
    %8 = tpu.matmul %3, %7, %cst {dimension_numbers = #tpu.dot_dimension_numbers<[0], [0], [1], [1], [0, 1, 1, 1], [], []>} : vector<32x128xf32>, vector<32x128xf32>, vector<128x128xf32> -> vector<128x128xf32>
    %c0_8 = arith.constant 0 : index
    %c0_9 = arith.constant 0 : index
    %9 = vector.load %arg12[%c0_8, %c0_9] : memref<1x128xf32, #tpu.memory_space<vmem>>, vector<1x128xf32>
    %cst_10 = arith.constant dense<0xFF800000> : vector<128xf32>
    %10 = vector.multi_reduction <maximumf>, %8, %cst_10 [0] : vector<128x128xf32> to vector<128xf32>
    %11 = vector.shape_cast %10 : vector<128xf32> to vector<1x128xf32>
    %12 = arith.maximumf %9, %11 : vector<1x128xf32>
    %13 = arith.subf %9, %12 : vector<1x128xf32>
    %14 = math.exp %13 : vector<1x128xf32>
    %15 = vector.broadcast %12 : vector<1x128xf32> to vector<128x128xf32>
    %16 = arith.subf %8, %15 : vector<128x128xf32>
    %17 = math.exp %16 : vector<128x128xf32>
    %c0_11 = arith.constant 0 : index
    %c0_12 = arith.constant 0 : index
    %18 = vector.load %arg13[%c0_11, %c0_12] : memref<1x128xf32, #tpu.memory_space<vmem>>, vector<1x128xf32>
    %19 = arith.mulf %14, %18 : vector<1x128xf32>
    %cst_13 = arith.constant dense<0.000000e+00> : vector<128xf32>
    %20 = vector.multi_reduction <add>, %17, %cst_13 [0] : vector<128x128xf32> to vector<128xf32>
    %21 = vector.shape_cast %20 : vector<128xf32> to vector<1x128xf32>
    %22 = arith.addf %19, %21 : vector<1x128xf32>
    %c0_14 = arith.constant 0 : index
    %c0_15 = arith.constant 0 : index
    %23 = vector.load %arg13[%c0_14, %c0_15] : memref<1x128xf32, #tpu.memory_space<vmem>>, vector<1x128xf32>
    tpu.vector_store %arg13[%c0_14, %c0_15], %22 {strides = array<i32>} : memref<1x128xf32, #tpu.memory_space<vmem>>, vector<1x128xf32>,
    %c0_16 = arith.constant 0 : index
    %c0_17 = arith.constant 0 : index
    %24 = vector.load %arg12[%c0_16, %c0_17] : memref<1x128xf32, #tpu.memory_space<vmem>>, vector<1x128xf32>
    tpu.vector_store %arg12[%c0_16, %c0_17], %12 {strides = array<i32>} : memref<1x128xf32, #tpu.memory_space<vmem>>, vector<1x128xf32>,
    %c0_18 = arith.constant 0 : index
    %c0_19 = arith.constant 0 : index
    %25 = vector.load %arg7[%c0_18, %c0_19] : memref<32x32xf32, #tpu.memory_space<vmem>>, vector<32x32xf32>
    %cst_20 = arith.constant dense<0.000000e+00> : vector<32x128xf32>
    %26 = tpu.matmul %25, %3, %cst_20 {dimension_numbers = #tpu.dot_dimension_numbers<[1], [0], [0], [1], [0, 0, 1, 1], [], []>} : vector<32x32xf32>, vector<32x128xf32>, vector<32x128xf32> -> vector<32x128xf32>
    %c0_21 = arith.constant 0 : index
    %c0_22 = arith.constant 0 : index
    %27 = vector.load %arg8[%c0_21, %c0_22] : memref<32x1xf32, #tpu.memory_space<vmem>>, vector<32x1xf32>
    %28 = vector.broadcast %27 : vector<32x1xf32> to vector<32x128xf32>
    %29 = arith.addf %26, %28 : vector<32x128xf32>
    %cst_23 = arith.constant dense<0.000000e+00> : vector<32x128xf32>
    %30 = tpu.matmul %29, %17, %cst_23 {dimension_numbers = #tpu.dot_dimension_numbers<[1], [0], [0], [1], [0, 0, 1, 1], [], []>} : vector<32x128xf32>, vector<128x128xf32>, vector<32x128xf32> -> vector<32x128xf32>
    %c0_24 = arith.constant 0 : index
    %c0_25 = arith.constant 0 : index
    %31 = vector.load %arg14[%c0_24, %c0_25] : memref<32x128xf32, #tpu.memory_space<vmem>>, vector<32x128xf32>
    %32 = vector.broadcast %14 : vector<1x128xf32> to vector<32x128xf32>
    %33 = arith.mulf %32, %31 : vector<32x128xf32>
    %34 = arith.addf %33, %30 : vector<32x128xf32>
    %c0_26 = arith.constant 0 : index
    %c0_27 = arith.constant 0 : index
    %35 = vector.load %arg14[%c0_26, %c0_27] : memref<32x128xf32, #tpu.memory_space<vmem>>, vector<32x128xf32>
    tpu.vector_store %arg14[%c0_26, %c0_27], %34 {strides = array<i32>} : memref<32x128xf32, #tpu.memory_space<vmem>>, vector<32x128xf32>,
    %c1_i32 = arith.constant 1 : i32
    %36 = arith.cmpi eq, %arg2, %c1_i32 : i32
    %37 = arith.extui %36 : i1 to i32
    %c0_i32_28 = arith.constant 0 : i32
    %38 = arith.cmpi ne, %37, %c0_i32_28 : i32
    scf.if %38 {
      %c0_29 = arith.constant 0 : index
      %c0_30 = arith.constant 0 : index
      %39 = vector.load %arg13[%c0_29, %c0_30] : memref<1x128xf32, #tpu.memory_space<vmem>>, vector<1x128xf32>
      %40 = tpu.reciprocal %39 : vector<1x128xf32> -> vector<1x128xf32>
      %c0_31 = arith.constant 0 : index
      %c0_32 = arith.constant 0 : index
      %41 = vector.load %arg14[%c0_31, %c0_32] : memref<32x128xf32, #tpu.memory_space<vmem>>, vector<32x128xf32>
      %42 = vector.broadcast %40 : vector<1x128xf32> to vector<32x128xf32>
      %43 = arith.mulf %41, %42 : vector<32x128xf32>
      %c0_33 = arith.constant 0 : index
      %c0_34 = arith.constant 0 : index
      %44 = memref.load %arg9[%c0_33, %c0_34] : memref<1x1xf32, #tpu.memory_space<smem>>
      %45 = vector.broadcast %44 : f32 to vector<32x128xf32>
      %46 = arith.mulf %45, %43 : vector<32x128xf32>
      %47 = arith.addf %46, %1 : vector<32x128xf32>
      %c0_35 = arith.constant 0 : index
      %c0_36 = arith.constant 0 : index
      %c0_37 = arith.constant 0 : index
      %48 = vector.load %arg10[%c0_35, %c0_36, %c0_37] : memref<1x32x128xf32, #tpu.memory_space<vmem>>, vector<1x32x128xf32>
      %49 = vector.shape_cast %48 : vector<1x32x128xf32> to vector<32x128xf32>
      %50 = vector.shape_cast %47 : vector<32x128xf32> to vector<1x32x128xf32>
      tpu.vector_store %arg10[%c0_35, %c0_36, %c0_37], %50 {strides = array<i32>} : memref<1x32x128xf32, #tpu.memory_space<vmem>>, vector<1x32x128xf32>,
    } else {
    }
    return
  }
  func.func @transform_0(%arg0: i32, %arg1: i32, %arg2: i32) -> (i32, i32, i32) {
    %c0_i32 = arith.constant 0 : i32
    %c0_i32_0 = arith.constant 0 : i32
    return %arg0, %c0_i32, %arg1 : i32, i32, i32
  }
  func.func @transform_1(%arg0: i32, %arg1: i32, %arg2: i32) -> (i32, i32, i32) {
    %c0_i32 = arith.constant 0 : i32
    %c0_i32_0 = arith.constant 0 : i32
    return %arg0, %c0_i32, %arg2 : i32, i32, i32
  }
  func.func @transform_2(%arg0: i32, %arg1: i32, %arg2: i32) -> (i32, i32) {
    %c0_i32 = arith.constant 0 : i32
    %c0_i32_0 = arith.constant 0 : i32
    %c0_i32_1 = arith.constant 0 : i32
    return %c0_i32, %c0_i32_0 : i32, i32
  }
  func.func @transform_3(%arg0: i32, %arg1: i32, %arg2: i32) -> (i32, i32) {
    %c0_i32 = arith.constant 0 : i32
    %c0_i32_0 = arith.constant 0 : i32
    %c0_i32_1 = arith.constant 0 : i32
    return %c0_i32, %c0_i32_0 : i32, i32
  }
  func.func @transform_4(%arg0: i32, %arg1: i32, %arg2: i32) -> (i32, i32) {
    %c0_i32 = arith.constant 0 : i32
    %c0_i32_0 = arith.constant 0 : i32
    %c0_i32_1 = arith.constant 0 : i32
    return %c0_i32, %c0_i32_0 : i32, i32
  }
  func.func @transform_5(%arg0: i32, %arg1: i32, %arg2: i32) -> (i32, i32) {
    %c0_i32 = arith.constant 0 : i32
    %c0_i32_0 = arith.constant 0 : i32
    %c0_i32_1 = arith.constant 0 : i32
    return %c0_i32, %c0_i32_0 : i32, i32
  }
  func.func @transform_6(%arg0: i32, %arg1: i32, %arg2: i32) -> (i32, i32) {
    %c0_i32 = arith.constant 0 : i32
    %c0_i32_0 = arith.constant 0 : i32
    %c0_i32_1 = arith.constant 0 : i32
    return %c0_i32, %c0_i32_0 : i32, i32
  }
  func.func @transform_7(%arg0: i32, %arg1: i32, %arg2: i32) -> (i32, i32, i32) {
    %c0_i32 = arith.constant 0 : i32
    %c0_i32_0 = arith.constant 0 : i32
    return %arg0, %c0_i32, %arg1 : i32, i32, i32
  }
}

</mosaic_0001>

<llo_original>
// kernel: tpu_custom_call.1
$region0: #{tpu_custom_call.1}
  #allocation0 [shape = 'u32[]', space=smem, size = 0x4, offset = 0x4, fixed_abs, tag = 'smem constant byte address 0x4 - core index']
  #allocation1 [shape = 'u32[144,128]{1,0:T(1,128)}', space=vmem, size = 0x12000, scoped, tag = 'internal scratch']
  #allocation2 [shape = 'f32[32,128]{1,0:T(8,128)}', space=vmem, size = 0x4000, scoped, tag = 'scratch operand']
  #allocation3 [shape = 'f32[1,128]{1,0:T(1,128)}', space=vmem, size = 0x200, scoped, tag = 'scratch operand']
  #allocation4 [shape = 'f32[1,128]{1,0:T(1,128)}', space=vmem, size = 0x200, scoped, tag = 'scratch operand']
  #allocation5 [shape = 'f32[32,128]{1,0:T(8,128)}', space=vmem, size = 0x4000, scoped, tag = 'scratch operand']
  #allocation6 [shape = 'f32[1,1]{1,0:T(1,128)S(6)}', space=smem, size = 0x200, scoped, tag = 'scoped memory for tpu_custom_call.1']
  %s0 = inlined_call_operand.hbm [shape: f32[2,32,256], index: 0, kind: input, shape index: {}]
  %s1 = inlined_call_operand.hbm [shape: f32[2,32,256], index: 1, kind: input, shape index: {}]
  %s2 = inlined_call_operand.vmem [shape: f32[32,32], index: 2, kind: input, shape index: {}]
  %s3 = inlined_call_operand.vmem [shape: f32[32,1], index: 3, kind: input, shape index: {}]
  %s4 = inlined_call_operand.vmem [shape: f32[32,32], index: 4, kind: input, shape index: {}]
  %s5 = inlined_call_operand.vmem [shape: f32[32,1], index: 5, kind: input, shape index: {}]
  %s6 = inlined_call_operand.<no memory space> [shape: f32[1,1], index: 6, kind: input, shape index: {}]
  %s7 = inlined_call_operand.hbm [shape: f32[2,32,256], index: 7, kind: output, shape index: {}]
  %s8 = sld [smem:[#allocation0]]
  $region77: #{tpu_custom_call.1} parent=0
    _
  %s10 = ssub.s32 1, %s8
  %s11 = scalar_select 0, %s10, %s8
  %12 = sst [smem:[#allocation6]] %s6
  $region1: #{tpu_custom_call.1} parent=0
    #allocation7 [shape = 'u8[32768]{0}', space=vmem, size = 0x8000, scoped, tag = 'input window, operand 0']
    #allocation8 [shape = 's32[2]{0}', space=sflag, size = 0x8, scoped, tag = 'scoped memory for tpu_custom_call.1']
    #allocation9 [shape = 's32[2]{0}', space=sflag, size = 0x8, scoped, tag = 'scoped memory for tpu_custom_call.1']
    #allocation10 [shape = 'u8[32768]{0}', space=vmem, size = 0x8000, scoped, tag = 'input window, operand 1']
    #allocation11 [shape = 's32[2]{0}', space=sflag, size = 0x8, scoped, tag = 'scoped memory for tpu_custom_call.1']
    #allocation12 [shape = 'u8[32768]{0}', space=vmem, size = 0x8000, scoped, tag = 'output window, operand 0']
    %13 = vsyncpa [#allocation8], 0
    %s14 = scalar_lea.sflag [#allocation8], 1
    %15 = vsyncpa %s14, 0
    %16 = vsyncpa [#allocation11], 0
    %s17 = scalar_lea.sflag [#allocation11], 1
    %18 = vsyncpa %s17, 0
    %19 = vsyncpa [#allocation9], 0
    %s20 = scalar_lea.sflag [#allocation9], 1
    %21 = vsyncpa %s20, 0
    loop: start=0, step=1, limit=10
    $region2: #{tpu_custom_call.1} parent=1 // loop_pre_header
      _
    $region3: #{tpu_custom_call.1} parent=1 // loop_header
      %s23 = sphi 0, %s27
      %p24 = scmp.ge.s32.totalorder %s23, 10
      %s30 = sphi 0, %s49
      %s31 = sphi 0, %s45
      %s32 = sphi 0, %s41
      %s33 = sphi 0, %s30
      %s34 = sphi 0, %s31
      %s35 = sphi 0, %s32
      %s36 = sphi 0, %s33
      %s37 = sphi 0, %s34
      %s38 = sphi 0, %s35
      %s54 = sphi 0, %s56
      %s57 = sphi 0, %s54
      %s58 = sphi 0, %s57
      %s74 = sphi 0, %s58
      %s82 = sphi 0, %s84
      %s85 = sphi 0, %s82
      %s86 = sphi 0, %s85
      %s102 = sphi 0, %s86
      %s106 = sphi 0, %s106
      %s108 = sphi 0, %s106
      %s109 = sphi 0, %s108
      %s123 = sphi 0, %s109
      %s127 = sphi 0, %s127
      %s129 = sphi 0, %s127
      %s130 = sphi 0, %s129
      %s144 = sphi 0, %s130
      %s148 = sphi 0, %s148
      %s150 = sphi 0, %s148
      %s151 = sphi 0, %s150
      %s165 = sphi 0, %s151
      %s169 = sphi 0, %s169
      %s171 = sphi 0, %s169
      %s172 = sphi 0, %s171
      %s186 = sphi 0, %s172
      %s190 = sphi 0, %s190
      %s192 = sphi 0, %s190
      %s193 = sphi 0, %s192
      %s207 = sphi 0, %s193
      %s215 = sphi 0, %s217
      %s218 = sphi 0, %s215
      %s219 = sphi 0, %s218
      %s235 = sphi 0, %s219
    $region4: #{tpu_custom_call.1} parent=1 // loop_header_branch
      %26 = sbr.rel (%p24) target = $region8
    $region5: #{tpu_custom_call.1} parent=1 // loop_body
      %s28 = ssub.s32 %s23, 1
      %s29 = ssub.s32 %s23, 2
      %s39 = sadd.s32 1, %s32
      %p40 = scmp.ge.s32.totalorder %s39, 2
      %s41 = scalar_select %p40, 0, %s39
      %s42 = sadd.s32 1, %s31
      %s43 = scalar_select %p40, %s42, %s31
      %p44 = scmp.ge.s32.totalorder %s43, 2
      %s45 = scalar_select %p44, 0, %s43
      %s46 = sadd.s32 1, %s30
      %s47 = scalar_select %p44, %s46, %s30
      %p48 = scmp.ge.s32.totalorder %s47, 2
      %s49 = scalar_select %p48, 0, %s47
      %s50 = ssub.s32 %s30, %s49
      %s51 = ssub.s32 %s31, %s45
      %s52 = sor.u32 %s50, %s51
      %p53 = scmp.eq.s32.totalorder %s52, 0
      %s55 = sadd.s32 %s54, 1
      %s56 = scalar_select %p53, %s54, %s55
      %p59 = pneg %p53
      %p60 = scmp.eq.s32.totalorder %s23, 7
      %p61 = por %p59, %p60
      %p62 = scmp.ne.s32.totalorder %s54, %s57
      %p63 = scmp.eq.s32.totalorder %s23, 0
      %p64 = por %p62, %p63
      %p65 = scmp.ne.s32.totalorder %s54, %s57
      %p66 = scmp.eq.s32.totalorder %s28, 7
      %p67 = por %p65, %p66
      %p68 = scmp.ne.s32.totalorder %s57, %s58
      %p69 = scmp.eq.s32.totalorder %s28, 0
      %p70 = por %p68, %p69
      %p71 = scmp.ne.s32.totalorder %s57, %s58
      %p72 = scmp.eq.s32.totalorder %s29, 7
      %p73 = por %p71, %p72
      %p75 = scmp.ne.s32.totalorder %s58, %s74
      %p76 = scmp.eq.s32.totalorder %s29, 0
      %p77 = por %p75, %p76
      %s78 = ssub.s32 %s30, %s49
      %s79 = ssub.s32 %s32, %s41
      %s80 = sor.u32 %s78, %s79
      %p81 = scmp.eq.s32.totalorder %s80, 0
      %s83 = sadd.s32 %s82, 1
      %s84 = scalar_select %p81, %s82, %s83
      %p87 = pneg %p81
      %p88 = scmp.eq.s32.totalorder %s23, 7
      %p89 = por %p87, %p88
      %p90 = scmp.ne.s32.totalorder %s82, %s85
      %p91 = scmp.eq.s32.totalorder %s23, 0
      %p92 = por %p90, %p91
      %p93 = scmp.ne.s32.totalorder %s82, %s85
      %p94 = scmp.eq.s32.totalorder %s28, 7
      %p95 = por %p93, %p94
      %p96 = scmp.ne.s32.totalorder %s85, %s86
      %p97 = scmp.eq.s32.totalorder %s28, 0
      %p98 = por %p96, %p97
      %p99 = scmp.ne.s32.totalorder %s85, %s86
      %p100 = scmp.eq.s32.totalorder %s29, 7
      %p101 = por %p99, %p100
      %p103 = scmp.ne.s32.totalorder %s86, %s102
      %p104 = scmp.eq.s32.totalorder %s29, 0
      %p105 = por %p103, %p104
      %s107 = sadd.s32 %s106, 1
      %p110 = scmp.eq.s32.totalorder %s23, 7
      %p111 = scmp.ne.s32.totalorder %s106, %s108
      %p112 = scmp.eq.s32.totalorder %s23, 0
      %p113 = por %p111, %p112
      %p114 = scmp.ne.s32.totalorder %s106, %s108
      %p115 = scmp.eq.s32.totalorder %s28, 7
      %p116 = por %p114, %p115
      %p117 = scmp.ne.s32.totalorder %s108, %s109
      %p118 = scmp.eq.s32.totalorder %s28, 0
      %p119 = por %p117, %p118
      %p120 = scmp.ne.s32.totalorder %s108, %s109
      %p121 = scmp.eq.s32.totalorder %s29, 7
      %p122 = por %p120, %p121
      %p124 = scmp.ne.s32.totalorder %s109, %s123
      %p125 = scmp.eq.s32.totalorder %s29, 0
      %p126 = por %p124, %p125
      %s128 = sadd.s32 %s127, 1
      %p131 = scmp.eq.s32.totalorder %s23, 7
      %p132 = scmp.ne.s32.totalorder %s127, %s129
      %p133 = scmp.eq.s32.totalorder %s23, 0
      %p134 = por %p132, %p133
      %p135 = scmp.ne.s32.totalorder %s127, %s129
      %p136 = scmp.eq.s32.totalorder %s28, 7
      %p137 = por %p135, %p136
      %p138 = scmp.ne.s32.totalorder %s129, %s130
      %p139 = scmp.eq.s32.totalorder %s28, 0
      %p140 = por %p138, %p139
      %p141 = scmp.ne.s32.totalorder %s129, %s130
      %p142 = scmp.eq.s32.totalorder %s29, 7
      %p143 = por %p141, %p142
      %p145 = scmp.ne.s32.totalorder %s130, %s144
      %p146 = scmp.eq.s32.totalorder %s29, 0
      %p147 = por %p145, %p146
      %s149 = sadd.s32 %s148, 1
      %p152 = scmp.eq.s32.totalorder %s23, 7
      %p153 = scmp.ne.s32.totalorder %s148, %s150
      %p154 = scmp.eq.s32.totalorder %s23, 0
      %p155 = por %p153, %p154
      %p156 = scmp.ne.s32.totalorder %s148, %s150
      %p157 = scmp.eq.s32.totalorder %s28, 7
      %p158 = por %p156, %p157
      %p159 = scmp.ne.s32.totalorder %s150, %s151
      %p160 = scmp.eq.s32.totalorder %s28, 0
      %p161 = por %p159, %p160
      %p162 = scmp.ne.s32.totalorder %s150, %s151
      %p163 = scmp.eq.s32.totalorder %s29, 7
      %p164 = por %p162, %p163
      %p166 = scmp.ne.s32.totalorder %s151, %s165
      %p167 = scmp.eq.s32.totalorder %s29, 0
      %p168 = por %p166, %p167
      %s170 = sadd.s32 %s169, 1
      %p173 = scmp.eq.s32.totalorder %s23, 7
      %p174 = scmp.ne.s32.totalorder %s169, %s171
      %p175 = scmp.eq.s32.totalorder %s23, 0
      %p176 = por %p174, %p175
      %p177 = scmp.ne.s32.totalorder %s169, %s171
      %p178 = scmp.eq.s32.totalorder %s28, 7
      %p179 = por %p177, %p178
      %p180 = scmp.ne.s32.totalorder %s171, %s172
      %p181 = scmp.eq.s32.totalorder %s28, 0
      %p182 = por %p180, %p181
      %p183 = scmp.ne.s32.totalorder %s171, %s172
      %p184 = scmp.eq.s32.totalorder %s29, 7
      %p185 = por %p183, %p184
      %p187 = scmp.ne.s32.totalorder %s172, %s186
      %p188 = scmp.eq.s32.totalorder %s29, 0
      %p189 = por %p187, %p188
      %s191 = sadd.s32 %s190, 1
      %p194 = scmp.eq.s32.totalorder %s23, 7
      %p195 = scmp.ne.s32.totalorder %s190, %s192
      %p196 = scmp.eq.s32.totalorder %s23, 0
      %p197 = por %p195, %p196
      %p198 = scmp.ne.s32.totalorder %s190, %s192
      %p199 = scmp.eq.s32.totalorder %s28, 7
      %p200 = por %p198, %p199
      %p201 = scmp.ne.s32.totalorder %s192, %s193
      %p202 = scmp.eq.s32.totalorder %s28, 0
      %p203 = por %p201, %p202
      %p204 = scmp.ne.s32.totalorder %s192, %s193
      %p205 = scmp.eq.s32.totalorder %s29, 7
      %p206 = por %p204, %p205
      %p208 = scmp.ne.s32.totalorder %s193, %s207
      %p209 = scmp.eq.s32.totalorder %s29, 0
      %p210 = por %p208, %p209
      %s211 = ssub.s32 %s30, %s49
      %s212 = ssub.s32 %s31, %s45
      %s213 = sor.u32 %s211, %s212
      %p214 = scmp.eq.s32.totalorder %s213, 0
      %s216 = sadd.s32 %s215, 1
      %s217 = scalar_select %p214, %s215, %s216
      %p220 = pneg %p214
      %p221 = scmp.eq.s32.totalorder %s23, 7
      %p222 = por %p220, %p221
      %p223 = scmp.ne.s32.totalorder %s215, %s218
      %p224 = scmp.eq.s32.totalorder %s23, 0
      %p225 = por %p223, %p224
      %p226 = scmp.ne.s32.totalorder %s215, %s218
      %p227 = scmp.eq.s32.totalorder %s28, 7
      %p228 = por %p226, %p227
      %p229 = scmp.ne.s32.totalorder %s218, %s219
      %p230 = scmp.eq.s32.totalorder %s28, 0
      %p231 = por %p229, %p230
      %p232 = scmp.ne.s32.totalorder %s218, %s219
      %p233 = scmp.eq.s32.totalorder %s29, 7
      %p234 = por %p232, %p233
      %p236 = scmp.ne.s32.totalorder %s219, %s235
      %p237 = scmp.eq.s32.totalorder %s29, 0
      %p238 = por %p236, %p237
      %p239 = scmp.le.s32.totalorder 1, %s23
      %p240 = scmp.lt.s32.totalorder %s23, 9
      %p241 = pnand %p239, %p240
      %p242 = pneg %p241
      // Predicated region
      $region9: #{tpu_custom_call.1} parent=5 // pred_check
        _
      $region10: #{tpu_custom_call.1} parent=5 // pred_check_branch
        %244 = sbr.rel (%p241) target = $region12
      $region11: #{tpu_custom_call.1} parent=5 // pred_region
        %s245 = ssub.s32 %s23, 1
        // Predicated region
        $region13: #{tpu_custom_call.1} parent=11 // pred_check
          %p246 = pneg %p119
        $region14: #{tpu_custom_call.1} parent=11 // pred_check_branch
          %248 = sbr.rel (%p246) target = $region16
        $region15: #{tpu_custom_call.1} parent=11 // pred_region
          _
        $region16: #{tpu_custom_call.1} parent=11 // pred_fallthru
          _
        // Predicated region
        $region17: #{tpu_custom_call.1} parent=11 // pred_check
          %p249 = pneg %p140
        $region18: #{tpu_custom_call.1} parent=11 // pred_check_branch
          %251 = sbr.rel (%p249) target = $region20
        $region19: #{tpu_custom_call.1} parent=11 // pred_region
          _
        $region20: #{tpu_custom_call.1} parent=11 // pred_fallthru
          _
        // Predicated region
        $region21: #{tpu_custom_call.1} parent=11 // pred_check
          %p252 = pneg %p161
        $region22: #{tpu_custom_call.1} parent=11 // pred_check_branch
          %254 = sbr.rel (%p252) target = $region24
        $region23: #{tpu_custom_call.1} parent=11 // pred_region
          _
        $region24: #{tpu_custom_call.1} parent=11 // pred_fallthru
          _
        // Predicated region
        $region25: #{tpu_custom_call.1} parent=11 // pred_check
          %p255 = pneg %p182
        $region26: #{tpu_custom_call.1} parent=11 // pred_check_branch
          %257 = sbr.rel (%p255) target = $region28
        $region27: #{tpu_custom_call.1} parent=11 // pred_region
          _
        $region28: #{tpu_custom_call.1} parent=11 // pred_fallthru
          _
        // Predicated region
        $region29: #{tpu_custom_call.1} parent=11 // pred_check
          %p258 = pneg %p203
        $region30: #{tpu_custom_call.1} parent=11 // pred_check_branch
          %260 = sbr.rel (%p258) target = $region32
        $region31: #{tpu_custom_call.1} parent=11 // pred_region
          _
        $region32: #{tpu_custom_call.1} parent=11 // pred_fallthru
          _
      $region12: #{tpu_custom_call.1} parent=5 // pred_fallthru
        _
      %p261 = scmp.lt.s32.totalorder %s23, 8
      // Predicated region
      $region33: #{tpu_custom_call.1} parent=5 // pred_check
        %p262 = pneg %p261
      $region34: #{tpu_custom_call.1} parent=5 // pred_check_branch
        %264 = sbr.rel (%p262) target = $region36
      $region35: #{tpu_custom_call.1} parent=5 // pred_region
        // Predicated region
        $region37: #{tpu_custom_call.1} parent=35 // pred_check
          %p265 = pneg %p64
        $region38: #{tpu_custom_call.1} parent=35 // pred_check_branch
          %267 = sbr.rel (%p265) target = $region40
        $region39: #{tpu_custom_call.1} parent=35 // pred_region
          %s268 = sand.u32 %s54, 1
          %s269 = scalar_lea.sflag [#allocation8], %s268
          %s270 = sand.u32 %s54, 1
          %s271 = smul.addr %s270, 32
          %s272 = scalar_lea.vmem [#allocation7], %s271
          %s274 = ssub.s32 512, 512
          %275 = vsyncadd %s269, %s274
          %s276 = smul.addr %s30, 8
          %s277 = sadd.s32 %s31, %s276
          %s278 = smul.addr %s277, 128
          %s279 = scalar_lea.hbm %s0, %s278
          %s280 = sshll.u32 %s272, 4
          %s281 = int_to_ptr.vmem [resolvable:$true] %s280
          %286 = dma.hbm_to_vmem [thread:$0]  %s279, 512, %s281, %s269, 256, 128, 8
        $region40: #{tpu_custom_call.1} parent=35 // pred_fallthru
          _
        // Predicated region
        $region41: #{tpu_custom_call.1} parent=35 // pred_check
          %p287 = pneg %p92
        $region42: #{tpu_custom_call.1} parent=35 // pred_check_branch
          %289 = sbr.rel (%p287) target = $region44
        $region43: #{tpu_custom_call.1} parent=35 // pred_region
          %s290 = sand.u32 %s82, 1
          %s291 = scalar_lea.sflag [#allocation11], %s290
          %s292 = sand.u32 %s82, 1
          %s293 = smul.addr %s292, 32
          %s294 = scalar_lea.vmem [#allocation10], %s293
          %s296 = ssub.s32 512, 512
          %297 = vsyncadd %s291, %s296
          %s298 = smul.addr %s30, 8
          %s299 = sadd.s32 %s32, %s298
          %s300 = smul.addr %s299, 128
          %s301 = scalar_lea.hbm %s1, %s300
          %s302 = sshll.u32 %s294, 4
          %s303 = int_to_ptr.vmem [resolvable:$true] %s302
          %308 = dma.hbm_to_vmem [thread:$0]  %s301, 512, %s303, %s291, 256, 128, 8
        $region44: #{tpu_custom_call.1} parent=35 // pred_fallthru
          _
      $region36: #{tpu_custom_call.1} parent=5 // pred_fallthru
        _
      %p309 = scmp.le.s32.totalorder 1, %s23
      %p310 = scmp.lt.s32.totalorder %s23, 9
      %p311 = pnand %p309, %p310
      %p312 = pneg %p311
      // Predicated region
      $region45: #{tpu_custom_call.1} parent=5 // pred_check
        _
      $region46: #{tpu_custom_call.1} parent=5 // pred_check_branch
        %314 = sbr.rel (%p311) target = $region48
      $region47: #{tpu_custom_call.1} parent=5 // pred_region
        %s315 = ssub.s32 %s23, 1
        %s316 = sand.u32 %s57, 1
        %s317 = scalar_lea.sflag [#allocation8], %s316
        %s318 = sand.u32 %s57, 1
        %s319 = smul.addr %s318, 32
        %s320 = scalar_lea.vmem [#allocation7], %s319
        // Predicated region
        $region49: #{tpu_custom_call.1} parent=47 // pred_check
          %p321 = pneg %p70
        $region50: #{tpu_custom_call.1} parent=47 // pred_check_branch
          %323 = sbr.rel (%p321) target = $region52
        $region51: #{tpu_custom_call.1} parent=47 // pred_region
          %324 = dma.done %s317, 512
        $region52: #{tpu_custom_call.1} parent=47 // pred_fallthru
          _
        %s325 = sand.u32 %s85, 1
        %s326 = scalar_lea.sflag [#allocation11], %s325
        %s327 = sand.u32 %s85, 1
        %s328 = smul.addr %s327, 32
        %s329 = scalar_lea.vmem [#allocation10], %s328
        // Predicated region
        $region53: #{tpu_custom_call.1} parent=47 // pred_check
          %p330 = pneg %p98
        $region54: #{tpu_custom_call.1} parent=47 // pred_check_branch
          %332 = sbr.rel (%p330) target = $region56
        $region55: #{tpu_custom_call.1} parent=47 // pred_region
          %333 = dma.done %s326, 512
        $region56: #{tpu_custom_call.1} parent=47 // pred_fallthru
          _
        %s334 = sand.u32 %s57, 1
        %s335 = scalar_lea.sflag [#allocation8], %s334
        %s336 = sand.u32 %s57, 1
        %s337 = smul.addr %s336, 32
        %s338 = scalar_lea.vmem [#allocation7], %s337
        %p339 = pneg %p70
        %p340 = pneg %p67
        %s341 = sand.u32 %s85, 1
        %s342 = scalar_lea.sflag [#allocation11], %s341
        %s343 = sand.u32 %s85, 1
        %s344 = smul.addr %s343, 32
        %s345 = scalar_lea.vmem [#allocation10], %s344
        %p346 = pneg %p98
        %p347 = pneg %p95
        %p348 = pneg %p119
        %p349 = pneg %p116
        %p350 = pneg %p140
        %p351 = pneg %p137
        %p352 = pneg %p161
        %p353 = pneg %p158
        %p354 = pneg %p182
        %p355 = pneg %p179
        %p356 = pneg %p203
        %p357 = pneg %p200
        %p358 = pneg %p231
        %p359 = pneg %p228
        %s360 = sand.u32 %s218, 1
        %s361 = scalar_lea.sflag [#allocation9], %s360
        %s362 = sand.u32 %s218, 1
        %s363 = smul.addr %s362, 32
        %s364 = scalar_lea.vmem [#allocation12], %s363
        %v365 = vld [vmem:[%s320] sm:$0xff]
        %v366 = vld [vmem:[%s320 + $0x8] sm:$0xff]
        %v367 = vld [vmem:[%s320 + $0x10] sm:$0xff]
        %v368 = vld [vmem:[%s320 + $0x18] sm:$0xff]
        %v369 = vld [vmem:[%s329] sm:$0xff]
        %v370 = vld [vmem:[%s329 + $0x8] sm:$0xff]
        %v371 = vld [vmem:[%s329 + $0x10] sm:$0xff]
        %v372 = vld [vmem:[%s329 + $0x18] sm:$0xff]
        %p373 = scmp.eq.s32.totalorder %s35, 0
        // Predicated region
        $region57: #{tpu_custom_call.1} parent=47 // pred_check
          %p374 = pneg %p373
        $region58: #{tpu_custom_call.1} parent=47 // pred_check_branch
          %376 = sbr.rel (%p374) target = $region60
        $region59: #{tpu_custom_call.1} parent=47 // pred_region
          %v377 = vld [vmem:[%s2] sm:$0xff]
          %v378 = vld [vmem:[%s2 + $0x8] sm:$0xff]
          %v379 = vld [vmem:[%s2 + $0x10] sm:$0xff]
          %v380 = vld [vmem:[%s2 + $0x18] sm:$0xff]
          %v381 = vld [vmem:[%s3] sm:$0xff]
          %v382 = vld [vmem:[%s3 + $0x8] sm:$0xff]
          %v383 = vld [vmem:[%s3 + $0x10] sm:$0xff]
          %v384 = vld [vmem:[%s3 + $0x18] sm:$0xff]
          %386 = vset.pattern.permute.xlu0 0
          %387 = vperm.xlu0 %386, %v381
          %v388 = vpop.permute.xlu0 %387
          %391 = vset.pattern.permute.xlu0 0
          %392 = vperm.xlu0 %391, %v382
          %v393 = vpop.permute.xlu0 %392
          %396 = vset.pattern.permute.xlu0 0
          %397 = vperm.xlu0 %396, %v383
          %v398 = vpop.permute.xlu0 %397
          %401 = vset.pattern.permute.xlu0 0
          %402 = vperm.xlu0 %401, %v384
          %v403 = vpop.permute.xlu0 %402
          %vm405 = vcmask 261120
          %v407 = vsel %vm405, %v377, 0
          %v410 = vsel %vm405, %v378, 0
          %v413 = vsel %vm405, %v379, 0
          %v416 = vsel %vm405, %v380, 0
          %418 = vmatprep.subr.mxu0 0.0
          %419 = vmatpush1.msra.mxu0 0.0
          %420 = vmatprep.subr.mxu0 0.0
          %421 = vmatpush1.msra.mxu0 0.0
          %422 = vmatprep.subr.mxu0 0.0
          %423 = vmatpush1.msra.mxu0 0.0
          %424 = vmatprep.subr.mxu0 0.0
          %425 = vmatpush1.msra.mxu0 0.0
          %426 = vmatprep.subr.mxu0 0.0
          %427 = vmatpush1.msra.mxu0 0.0
          %428 = vmatprep.subr.mxu0 0.0
          %429 = vmatpush1.msra.mxu0 0.0
          %430 = vmatprep.subr.mxu0 0.0
          %431 = vmatpush1.msra.mxu0 0.0
          %432 = vmatprep.subr.mxu0 0.0
          %433 = vmatpush1.msra.mxu0 0.0
          %434 = vmatprep.subr.mxu0 0.0
          %435 = vmatpush1.msra.mxu0 0.0
          %436 = vmatprep.subr.mxu0 0.0
          %437 = vmatpush1.msra.mxu0 0.0
          %438 = vmatprep.subr.mxu0 0.0
          %439 = vmatpush1.msra.mxu0 0.0
          %440 = vmatprep.subr.mxu0 0.0
          %441 = vmatpush1.msra.mxu0 0.0
          %442 = vmatprep.subr.mxu0 0.0
          %443 = vmatpush1.msra.mxu0 %v368
          %444 = vmatprep.subr.mxu0 0.0
          %445 = vmatpush1.msra.mxu0 %v367
          %446 = vmatprep.subr.mxu0 0.0
          %447 = vmatpush1.msra.mxu0 %v366
          %448 = vmatprep.subr.mxu0 0.0
          %449 = vmatpush1.msra.mxu0 %v365
          %450 = vmatprep.subr.mxu0 0.0
          %451 = vmatpush2.msra.mxu0 0.0
          %452 = vmatprep.subr.mxu0 0.0
          %453 = vmatpush2.msra.mxu0 0.0
          %454 = vmatprep.subr.mxu0 0.0
          %455 = vmatpush2.msra.mxu0 0.0
          %456 = vmatprep.subr.mxu0 0.0
          %457 = vmatpush2.msra.mxu0 0.0
          %458 = vmatprep.subr.mxu0 0.0
          %459 = vmatpush2.msra.mxu0 0.0
          %460 = vmatprep.subr.mxu0 0.0
          %461 = vmatpush2.msra.mxu0 0.0
          %462 = vmatprep.subr.mxu0 0.0
          %463 = vmatpush2.msra.mxu0 0.0
          %464 = vmatprep.subr.mxu0 0.0
          %465 = vmatpush2.msra.mxu0 0.0
          %466 = vmatprep.subr.mxu0 0.0
          %467 = vmatpush2.msra.mxu0 0.0
          %468 = vmatprep.subr.mxu0 0.0
          %469 = vmatpush2.msra.mxu0 0.0
          %470 = vmatprep.subr.mxu0 0.0
          %471 = vmatpush2.msra.mxu0 0.0
          %472 = vmatprep.subr.mxu0 0.0
          %473 = vmatpush2.msra.mxu0 0.0
          %474 = vmatprep.subr.mxu0 0.0
          %475 = vmatpush2.msra.mxu0 0.0
          %476 = vmatprep.subr.mxu0 0.0
          %477 = vmatpush2.msra.mxu0 0.0
          %478 = vmatprep.subr.mxu0 0.0
          %479 = vmatpush2.msra.mxu0 0.0
          %480 = vmatprep.subr.mxu0 0.0
          %481 = vmatpush2.msra.mxu0 0.0
          %482 = vmatprep.mubr.f32.mxu0 0.0
          %483 = vmatmul.mubr.f32.gmra.mxu0 %v407
          %v484 = vpop.f32.mrf.mxu0
          %v485 = vadd.f32 %v388, %v484
          %v486 = vpop.f32.mrf.mxu0
          %487 = vmatprep.mubr.f32.mxu0 0.0
          %488 = vmatmul.mubr.f32.gmra.mxu0 %v410
          %v489 = vpop.f32.mrf.mxu0
          %v490 = vadd.f32 %v393, %v489
          %v491 = vpop.f32.mrf.mxu0
          %492 = vmatprep.mubr.f32.mxu0 0.0
          %493 = vmatmul.mubr.f32.gmra.mxu0 %v413
          %v494 = vpop.f32.mrf.mxu0
          %v495 = vadd.f32 %v398, %v494
          %v496 = vpop.f32.mrf.mxu0
          %497 = vmatprep.mubr.f32.mxu0 0.0
          %498 = vmatmul.mubr.f32.gmra.mxu0 %v416
          %v499 = vpop.f32.mrf.mxu0
          %v500 = vadd.f32 %v403, %v499
          %v501 = vpop.f32.mrf.mxu0
          %502 = vdwg.mxu0
          %503 = vst [vmem:[#allocation2] sm:$0xff] %v485
          %504 = vst [vmem:[#allocation2 + $0x8] sm:$0xff] %v490
          %505 = vst [vmem:[#allocation2 + $0x10] sm:$0xff] %v495
          %506 = vst [vmem:[#allocation2 + $0x18] sm:$0xff] %v500
          %507 = vst [vmem:[#allocation3] sm:$0x1] -inf
          %508 = vst [vmem:[#allocation4] sm:$0x1] 0.0
          %509 = vst [vmem:[#allocation5] sm:$0xff] 0.0
          %510 = vst [vmem:[#allocation5 + $0x8] sm:$0xff] 0.0
          %511 = vst [vmem:[#allocation5 + $0x10] sm:$0xff] 0.0
          %512 = vst [vmem:[#allocation5 + $0x18] sm:$0xff] 0.0
        $region60: #{tpu_custom_call.1} parent=47 // pred_fallthru
          _
        %v513 = vld [vmem:[#allocation2] sm:$0xff]
        %v514 = vld [vmem:[#allocation2 + $0x8] sm:$0xff]
        %v515 = vld [vmem:[#allocation2 + $0x10] sm:$0xff]
        %v516 = vld [vmem:[#allocation2 + $0x18] sm:$0xff]
        %517 = vxpose.xlu0.b32.start [1/16] %v369, 128
        %518 = vxpose.xlu0.b32.cont [2/16] %v370, 128
        %519 = vxpose.xlu0.b32.cont [3/16] %v371, 128
        %520 = vxpose.xlu0.b32.cont [4/16] %v372, 128
        %521 = vxpose.xlu0.b32.cont [5/16] 0.0, 128
        %522 = vxpose.xlu0.b32.cont [6/16] 0.0, 128
        %523 = vxpose.xlu0.b32.cont [7/16] 0.0, 128
        %524 = vxpose.xlu0.b32.cont [8/16] 0.0, 128
        %525 = vxpose.xlu0.b32.cont [9/16] 0.0, 128
        %526 = vxpose.xlu0.b32.cont [10/16] 0.0, 128
        %527 = vxpose.xlu0.b32.cont [11/16] 0.0, 128
        %528 = vxpose.xlu0.b32.cont [12/16] 0.0, 128
        %529 = vxpose.xlu0.b32.cont [13/16] 0.0, 128
        %530 = vxpose.xlu0.b32.cont [14/16] 0.0, 128
        %531 = vxpose.xlu0.b32.cont [15/16] 0.0, 128
        %532 = vxpose.xlu0.b32.end [16/16] 0.0, 128
        %v533 = vpop.trf.xlu0
        %v534 = vpop.trf.xlu0
        %v535 = vpop.trf.xlu0
        %v536 = vpop.trf.xlu0
        %v537 = vpop.trf.xlu0
        %v538 = vpop.trf.xlu0
        %v539 = vpop.trf.xlu0
        %v540 = vpop.trf.xlu0
        %v541 = vpop.trf.xlu0
        %v542 = vpop.trf.xlu0
        %v543 = vpop.trf.xlu0
        %v544 = vpop.trf.xlu0
        %v545 = vpop.trf.xlu0
        %v546 = vpop.trf.xlu0
        %v547 = vpop.trf.xlu0
        %v548 = vpop.trf.xlu0
        %vm549 = vcmask 261120
        %v551 = vsel %vm549, %v533, 0
        %v554 = vsel %vm549, %v534, 0
        %v557 = vsel %vm549, %v535, 0
        %v560 = vsel %vm549, %v536, 0
        %v563 = vsel %vm549, %v537, 0
        %v566 = vsel %vm549, %v538, 0
        %v569 = vsel %vm549, %v539, 0
        %v572 = vsel %vm549, %v540, 0
        %v575 = vsel %vm549, %v541, 0
        %v578 = vsel %vm549, %v542, 0
        %v581 = vsel %vm549, %v543, 0
        %v584 = vsel %vm549, %v544, 0
        %v587 = vsel %vm549, %v545, 0
        %v590 = vsel %vm549, %v546, 0
        %v593 = vsel %vm549, %v547, 0
        %v596 = vsel %vm549, %v548, 0
        %598 = vmatprep.subr.mxu0 0.0
        %599 = vmatpush1.msra.mxu0 0.0
        %600 = vmatprep.subr.mxu0 0.0
        %601 = vmatpush1.msra.mxu0 0.0
        %602 = vmatprep.subr.mxu0 0.0
        %603 = vmatpush1.msra.mxu0 0.0
        %604 = vmatprep.subr.mxu0 0.0
        %605 = vmatpush1.msra.mxu0 0.0
        %606 = vmatprep.subr.mxu0 0.0
        %607 = vmatpush1.msra.mxu0 0.0
        %608 = vmatprep.subr.mxu0 0.0
        %609 = vmatpush1.msra.mxu0 0.0
        %610 = vmatprep.subr.mxu0 0.0
        %611 = vmatpush1.msra.mxu0 0.0
        %612 = vmatprep.subr.mxu0 0.0
        %613 = vmatpush1.msra.mxu0 0.0
        %614 = vmatprep.subr.mxu0 0.0
        %615 = vmatpush1.msra.mxu0 0.0
        %616 = vmatprep.subr.mxu0 0.0
        %617 = vmatpush1.msra.mxu0 0.0
        %618 = vmatprep.subr.mxu0 0.0
        %619 = vmatpush1.msra.mxu0 0.0
        %620 = vmatprep.subr.mxu0 0.0
        %621 = vmatpush1.msra.mxu0 0.0
        %622 = vmatprep.subr.mxu0 0.0
        %623 = vmatpush1.msra.mxu0 %v516
        %624 = vmatprep.subr.mxu0 0.0
        %625 = vmatpush1.msra.mxu0 %v515
        %626 = vmatprep.subr.mxu0 0.0
        %627 = vmatpush1.msra.mxu0 %v514
        %628 = vmatprep.subr.mxu0 0.0
        %629 = vmatpush1.msra.mxu0 %v513
        %630 = vmatprep.subr.mxu0 0.0
        %631 = vmatpush2.msra.mxu0 0.0
        %632 = vmatprep.subr.mxu0 0.0
        %633 = vmatpush2.msra.mxu0 0.0
        %634 = vmatprep.subr.mxu0 0.0
        %635 = vmatpush2.msra.mxu0 0.0
        %636 = vmatprep.subr.mxu0 0.0
        %637 = vmatpush2.msra.mxu0 0.0
        %638 = vmatprep.subr.mxu0 0.0
        %639 = vmatpush2.msra.mxu0 0.0
        %640 = vmatprep.subr.mxu0 0.0
        %641 = vmatpush2.msra.mxu0 0.0
        %642 = vmatprep.subr.mxu0 0.0
        %643 = vmatpush2.msra.mxu0 0.0
        %644 = vmatprep.subr.mxu0 0.0
        %645 = vmatpush2.msra.mxu0 0.0
        %646 = vmatprep.subr.mxu0 0.0
        %647 = vmatpush2.msra.mxu0 0.0
        %648 = vmatprep.subr.mxu0 0.0
        %649 = vmatpush2.msra.mxu0 0.0
        %650 = vmatprep.subr.mxu0 0.0
        %651 = vmatpush2.msra.mxu0 0.0
        %652 = vmatprep.subr.mxu0 0.0
        %653 = vmatpush2.msra.mxu0 0.0
        %654 = vmatprep.subr.mxu0 0.0
        %655 = vmatpush2.msra.mxu0 0.0
        %656 = vmatprep.subr.mxu0 0.0
        %657 = vmatpush2.msra.mxu0 0.0
        %658 = vmatprep.subr.mxu0 0.0
        %659 = vmatpush2.msra.mxu0 0.0
        %660 = vmatprep.subr.mxu0 0.0
        %661 = vmatpush2.msra.mxu0 0.0
        %662 = vmatprep.mubr.f32.mxu0 0.0
        %663 = vmatmul.mubr.f32.gmra.mxu0 %v551
        %v664 = vpop.f32.mrf.mxu0
        %v665 = vadd.f32 0.0, %v664
        %v666 = vpop.f32.mrf.mxu0
        %667 = vmatprep.mubr.f32.mxu0 0.0
        %668 = vmatmul.mubr.f32.gmra.mxu0 %v554
        %v669 = vpop.f32.mrf.mxu0
        %v670 = vadd.f32 0.0, %v669
        %v671 = vpop.f32.mrf.mxu0
        %672 = vmatprep.mubr.f32.mxu0 0.0
        %673 = vmatmul.mubr.f32.gmra.mxu0 %v557
        %v674 = vpop.f32.mrf.mxu0
        %v675 = vadd.f32 0.0, %v674
        %v676 = vpop.f32.mrf.mxu0
        %677 = vmatprep.mubr.f32.mxu0 0.0
        %678 = vmatmul.mubr.f32.gmra.mxu0 %v560
        %v679 = vpop.f32.mrf.mxu0
        %v680 = vadd.f32 0.0, %v679
        %v681 = vpop.f32.mrf.mxu0
        %682 = vmatprep.mubr.f32.mxu0 0.0
        %683 = vmatmul.mubr.f32.gmra.mxu0 %v563
        %v684 = vpop.f32.mrf.mxu0
        %v685 = vadd.f32 0.0, %v684
        %v686 = vpop.f32.mrf.mxu0
        %687 = vmatprep.mubr.f32.mxu0 0.0
        %688 = vmatmul.mubr.f32.gmra.mxu0 %v566
        %v689 = vpop.f32.mrf.mxu0
        %v690 = vadd.f32 0.0, %v689
        %v691 = vpop.f32.mrf.mxu0
        %692 = vmatprep.mubr.f32.mxu0 0.0
        %693 = vmatmul.mubr.f32.gmra.mxu0 %v569
        %v694 = vpop.f32.mrf.mxu0
        %v695 = vadd.f32 0.0, %v694
        %v696 = vpop.f32.mrf.mxu0
        %697 = vmatprep.mubr.f32.mxu0 0.0
        %698 = vmatmul.mubr.f32.gmra.mxu0 %v572
        %v699 = vpop.f32.mrf.mxu0
        %v700 = vadd.f32 0.0, %v699
        %v701 = vpop.f32.mrf.mxu0
        %702 = vmatprep.mubr.f32.mxu0 0.0
        %703 = vmatmul.mubr.f32.gmra.mxu0 %v575
        %v704 = vpop.f32.mrf.mxu0
        %v705 = vadd.f32 0.0, %v704
        %v706 = vpop.f32.mrf.mxu0
        %707 = vmatprep.mubr.f32.mxu0 0.0
        %708 = vmatmul.mubr.f32.gmra.mxu0 %v578
        %v709 = vpop.f32.mrf.mxu0
        %v710 = vadd.f32 0.0, %v709
        %v711 = vpop.f32.mrf.mxu0
        %712 = vmatprep.mubr.f32.mxu0 0.0
        %713 = vmatmul.mubr.f32.gmra.mxu0 %v581
        %v714 = vpop.f32.mrf.mxu0
        %v715 = vadd.f32 0.0, %v714
        %v716 = vpop.f32.mrf.mxu0
        %717 = vmatprep.mubr.f32.mxu0 0.0
        %718 = vmatmul.mubr.f32.gmra.mxu0 %v584
        %v719 = vpop.f32.mrf.mxu0
        %v720 = vadd.f32 0.0, %v719
        %v721 = vpop.f32.mrf.mxu0
        %722 = vmatprep.mubr.f32.mxu0 0.0
        %723 = vmatmul.mubr.f32.gmra.mxu0 %v587
        %v724 = vpop.f32.mrf.mxu0
        %v725 = vadd.f32 0.0, %v724
        %v726 = vpop.f32.mrf.mxu0
        %727 = vmatprep.mubr.f32.mxu0 0.0
        %728 = vmatmul.mubr.f32.gmra.mxu0 %v590
        %v729 = vpop.f32.mrf.mxu0
        %v730 = vadd.f32 0.0, %v729
        %v731 = vpop.f32.mrf.mxu0
        %732 = vmatprep.mubr.f32.mxu0 0.0
        %733 = vmatmul.mubr.f32.gmra.mxu0 %v593
        %v734 = vpop.f32.mrf.mxu0
        %v735 = vadd.f32 0.0, %v734
        %v736 = vpop.f32.mrf.mxu0
        %737 = vmatprep.mubr.f32.mxu0 0.0
        %738 = vmatmul.mubr.f32.gmra.mxu0 %v596
        %v739 = vpop.f32.mrf.mxu0
        %v740 = vadd.f32 0.0, %v739
        %v741 = vpop.f32.mrf.mxu0
        %742 = vdwg.mxu0
        %v743 = vld [vmem:[#allocation3] sm:$0x1]
        %v744 = vmax.f32 %v665, %v685
        %v745 = vmax.f32 %v670, %v690
        %v746 = vmax.f32 %v675, %v695
        %v747 = vmax.f32 %v680, %v700
        %v748 = vmax.f32 %v744, %v705
        %v749 = vmax.f32 %v745, %v710
        %v750 = vmax.f32 %v746, %v715
        %v751 = vmax.f32 %v747, %v720
        %v752 = vmax.f32 %v748, %v725
        %v753 = vmax.f32 %v749, %v730
        %v754 = vmax.f32 %v750, %v735
        %v755 = vmax.f32 %v751, %v740
        %v756 = vmax.f32 %v752, %v753
        %v757 = vmax.f32 %v754, %v755
        %v758 = vmax.f32 %v756, %v757
        %v759 = vrot.slane %v758, 4
        %v760 = vmax.f32 %v758, %v759
        %v761 = vrot.slane %v760, 2
        %v762 = vmax.f32 %v760, %v761
        %v763 = vrot.slane %v762, 1
        %v764 = vmax.f32 %v762, %v763
        %v765 = vmax.f32 %v743, %v764
        %v766 = vsub.f32 %v743, %v765
        %v767 = vmul.f32 %v766, 1.442695
        %v768 = vpow.pop %v767
        %v770 = vlaneseq
        %v771 = vshrl.u32 %v770, 7
        %v772 = vsub.s32 0, %v771
        %v773 = vrot.slane %v765, %v772
        %v775 = vsub.f32 %v665, %v773
        %v776 = vsub.f32 %v670, %v773
        %v777 = vsub.f32 %v675, %v773
        %v778 = vsub.f32 %v680, %v773
        %v779 = vsub.f32 %v685, %v773
        %v780 = vsub.f32 %v690, %v773
        %v781 = vsub.f32 %v695, %v773
        %v782 = vsub.f32 %v700, %v773
        %v783 = vsub.f32 %v705, %v773
        %v784 = vsub.f32 %v710, %v773
        %v785 = vsub.f32 %v715, %v773
        %v786 = vsub.f32 %v720, %v773
        %v787 = vsub.f32 %v725, %v773
        %v788 = vsub.f32 %v730, %v773
        %v789 = vsub.f32 %v735, %v773
        %v790 = vsub.f32 %v740, %v773
        %v791 = vmul.f32 %v775, 1.442695
        %v792 = vpow.pop %v791
        %v793 = vmul.f32 %v776, 1.442695
        %v794 = vpow.pop %v793
        %v795 = vmul.f32 %v777, 1.442695
        %v796 = vpow.pop %v795
        %v797 = vmul.f32 %v778, 1.442695
        %v798 = vpow.pop %v797
        %v799 = vmul.f32 %v779, 1.442695
        %v800 = vpow.pop %v799
        %v801 = vmul.f32 %v780, 1.442695
        %v802 = vpow.pop %v801
        %v803 = vmul.f32 %v781, 1.442695
        %v804 = vpow.pop %v803
        %v805 = vmul.f32 %v782, 1.442695
        %v806 = vpow.pop %v805
        %v807 = vmul.f32 %v783, 1.442695
        %v808 = vpow.pop %v807
        %v809 = vmul.f32 %v784, 1.442695
        %v810 = vpow.pop %v809
        %v811 = vmul.f32 %v785, 1.442695
        %v812 = vpow.pop %v811
        %v813 = vmul.f32 %v786, 1.442695
        %v814 = vpow.pop %v813
        %v815 = vmul.f32 %v787, 1.442695
        %v816 = vpow.pop %v815
        %v817 = vmul.f32 %v788, 1.442695
        %v818 = vpow.pop %v817
        %v819 = vmul.f32 %v789, 1.442695
        %v820 = vpow.pop %v819
        %v821 = vmul.f32 %v790, 1.442695
        %v822 = vpow.pop %v821
        %v823 = vld [vmem:[#allocation4] sm:$0x1]
        %v824 = vmul.f32 %v768, %v823
        %v825 = vadd.f32 %v792, %v794
        %v826 = vadd.f32 %v825, %v796
        %v827 = vadd.f32 %v826, %v798
        %v828 = vadd.f32 %v827, %v800
        %v829 = vadd.f32 %v828, %v802
        %v830 = vadd.f32 %v829, %v804
        %v831 = vadd.f32 %v830, %v806
        %v832 = vadd.f32 %v831, %v808
        %v833 = vadd.f32 %v832, %v810
        %v834 = vadd.f32 %v833, %v812
        %v835 = vadd.f32 %v834, %v814
        %v836 = vadd.f32 %v835, %v816
        %v837 = vadd.f32 %v836, %v818
        %v838 = vadd.f32 %v837, %v820
        %v839 = vadd.f32 %v838, %v822
        %v840 = vrot.slane %v839, 4
        %v841 = vadd.f32 %v839, %v840
        %v842 = vrot.slane %v841, 2
        %v843 = vadd.f32 %v841, %v842
        %v844 = vrot.slane %v843, 1
        %v845 = vadd.f32 %v843, %v844
        %v846 = vadd.f32 %v824, %v845
        %847 = vst [vmem:[#allocation4] sm:$0x1] %v846
        %848 = vst [vmem:[#allocation3] sm:$0x1] %v765
        %v849 = vld [vmem:[%s4] sm:$0xff]
        %v850 = vld [vmem:[%s4 + $0x8] sm:$0xff]
        %v851 = vld [vmem:[%s4 + $0x10] sm:$0xff]
        %v852 = vld [vmem:[%s4 + $0x18] sm:$0xff]
        %v853 = vld [vmem:[%s5] sm:$0xff]
        %v854 = vld [vmem:[%s5 + $0x8] sm:$0xff]
        %v855 = vld [vmem:[%s5 + $0x10] sm:$0xff]
        %v856 = vld [vmem:[%s5 + $0x18] sm:$0xff]
        %858 = vset.pattern.permute.xlu0 0
        %859 = vperm.xlu0 %858, %v853
        %v860 = vpop.permute.xlu0 %859
        %863 = vset.pattern.permute.xlu0 0
        %864 = vperm.xlu0 %863, %v854
        %v865 = vpop.permute.xlu0 %864
        %868 = vset.pattern.permute.xlu0 0
        %869 = vperm.xlu0 %868, %v855
        %v870 = vpop.permute.xlu0 %869
        %873 = vset.pattern.permute.xlu0 0
        %874 = vperm.xlu0 %873, %v856
        %v875 = vpop.permute.xlu0 %874
        %v878 = vsel %vm549, %v849, 0
        %v881 = vsel %vm549, %v850, 0
        %v884 = vsel %vm549, %v851, 0
        %v887 = vsel %vm549, %v852, 0
        %889 = vmatprep.subr.mxu0 0.0
        %890 = vmatpush1.msra.mxu0 0.0
        %891 = vmatprep.subr.mxu0 0.0
        %892 = vmatpush1.msra.mxu0 0.0
        %893 = vmatprep.subr.mxu0 0.0
        %894 = vmatpush1.msra.mxu0 0.0
        %895 = vmatprep.subr.mxu0 0.0
        %896 = vmatpush1.msra.mxu0 0.0
        %897 = vmatprep.subr.mxu0 0.0
        %898 = vmatpush1.msra.mxu0 0.0
        %899 = vmatprep.subr.mxu0 0.0
        %900 = vmatpush1.msra.mxu0 0.0
        %901 = vmatprep.subr.mxu0 0.0
        %902 = vmatpush1.msra.mxu0 0.0
        %903 = vmatprep.subr.mxu0 0.0
        %904 = vmatpush1.msra.mxu0 0.0
        %905 = vmatprep.subr.mxu0 0.0
        %906 = vmatpush1.msra.mxu0 0.0
        %907 = vmatprep.subr.mxu0 0.0
        %908 = vmatpush1.msra.mxu0 0.0
        %909 = vmatprep.subr.mxu0 0.0
        %910 = vmatpush1.msra.mxu0 0.0
        %911 = vmatprep.subr.mxu0 0.0
        %912 = vmatpush1.msra.mxu0 0.0
        %913 = vmatprep.subr.mxu0 0.0
        %914 = vmatpush1.msra.mxu0 %v372
        %915 = vmatprep.subr.mxu0 0.0
        %916 = vmatpush1.msra.mxu0 %v371
        %917 = vmatprep.subr.mxu0 0.0
        %918 = vmatpush1.msra.mxu0 %v370
        %919 = vmatprep.subr.mxu0 0.0
        %920 = vmatpush1.msra.mxu0 %v369
        %921 = vmatprep.subr.mxu0 0.0
        %922 = vmatpush2.msra.mxu0 0.0
        %923 = vmatprep.subr.mxu0 0.0
        %924 = vmatpush2.msra.mxu0 0.0
        %925 = vmatprep.subr.mxu0 0.0
        %926 = vmatpush2.msra.mxu0 0.0
        %927 = vmatprep.subr.mxu0 0.0
        %928 = vmatpush2.msra.mxu0 0.0
        %929 = vmatprep.subr.mxu0 0.0
        %930 = vmatpush2.msra.mxu0 0.0
        %931 = vmatprep.subr.mxu0 0.0
        %932 = vmatpush2.msra.mxu0 0.0
        %933 = vmatprep.subr.mxu0 0.0
        %934 = vmatpush2.msra.mxu0 0.0
        %935 = vmatprep.subr.mxu0 0.0
        %936 = vmatpush2.msra.mxu0 0.0
        %937 = vmatprep.subr.mxu0 0.0
        %938 = vmatpush2.msra.mxu0 0.0
        %939 = vmatprep.subr.mxu0 0.0
        %940 = vmatpush2.msra.mxu0 0.0
        %941 = vmatprep.subr.mxu0 0.0
        %942 = vmatpush2.msra.mxu0 0.0
        %943 = vmatprep.subr.mxu0 0.0
        %944 = vmatpush2.msra.mxu0 0.0
        %945 = vmatprep.subr.mxu0 0.0
        %946 = vmatpush2.msra.mxu0 0.0
        %947 = vmatprep.subr.mxu0 0.0
        %948 = vmatpush2.msra.mxu0 0.0
        %949 = vmatprep.subr.mxu0 0.0
        %950 = vmatpush2.msra.mxu0 0.0
        %951 = vmatprep.subr.mxu0 0.0
        %952 = vmatpush2.msra.mxu0 0.0
        %953 = vmatprep.mubr.f32.mxu0 0.0
        %954 = vmatmul.mubr.f32.gmra.mxu0 %v878
        %v955 = vpop.f32.mrf.mxu0
        %v956 = vadd.f32 %v860, %v955
        %v957 = vpop.f32.mrf.mxu0
        %958 = vmatprep.mubr.f32.mxu0 0.0
        %959 = vmatmul.mubr.f32.gmra.mxu0 %v881
        %v960 = vpop.f32.mrf.mxu0
        %v961 = vadd.f32 %v865, %v960
        %v962 = vpop.f32.mrf.mxu0
        %963 = vmatprep.mubr.f32.mxu0 0.0
        %964 = vmatmul.mubr.f32.gmra.mxu0 %v884
        %v965 = vpop.f32.mrf.mxu0
        %v966 = vadd.f32 %v870, %v965
        %v967 = vpop.f32.mrf.mxu0
        %968 = vmatprep.mubr.f32.mxu0 0.0
        %969 = vmatmul.mubr.f32.gmra.mxu0 %v887
        %v970 = vpop.f32.mrf.mxu0
        %v971 = vadd.f32 %v875, %v970
        %v972 = vpop.f32.mrf.mxu0
        %973 = vdwg.mxu0
        %974 = vmatprep.subr.mxu0 0.0
        %975 = vmatpush1.msra.mxu0 %v822
        %976 = vmatprep.subr.mxu0 0.0
        %977 = vmatpush1.msra.mxu0 %v820
        %978 = vmatprep.subr.mxu0 0.0
        %979 = vmatpush1.msra.mxu0 %v818
        %980 = vmatprep.subr.mxu0 0.0
        %981 = vmatpush1.msra.mxu0 %v816
        %982 = vmatprep.subr.mxu0 0.0
        %983 = vmatpush1.msra.mxu0 %v814
        %984 = vmatprep.subr.mxu0 0.0
        %985 = vmatpush1.msra.mxu0 %v812
        %986 = vmatprep.subr.mxu0 0.0
        %987 = vmatpush1.msra.mxu0 %v810
        %988 = vmatprep.subr.mxu0 0.0
        %989 = vmatpush1.msra.mxu0 %v808
        %990 = vmatprep.subr.mxu0 0.0
        %991 = vmatpush1.msra.mxu0 %v806
        %992 = vmatprep.subr.mxu0 0.0
        %993 = vmatpush1.msra.mxu0 %v804
        %994 = vmatprep.subr.mxu0 0.0
        %995 = vmatpush1.msra.mxu0 %v802
        %996 = vmatprep.subr.mxu0 0.0
        %997 = vmatpush1.msra.mxu0 %v800
        %998 = vmatprep.subr.mxu0 0.0
        %999 = vmatpush1.msra.mxu0 %v798
        %1000 = vmatprep.subr.mxu0 0.0
        %1001 = vmatpush1.msra.mxu0 %v796
        %1002 = vmatprep.subr.mxu0 0.0
        %1003 = vmatpush1.msra.mxu0 %v794
        %1004 = vmatprep.subr.mxu0 0.0
        %1005 = vmatpush1.msra.mxu0 %v792
        %1006 = vmatprep.subr.mxu0 0.0
        %1007 = vmatpush2.msra.mxu0 0.0
        %1008 = vmatprep.subr.mxu0 0.0
        %1009 = vmatpush2.msra.mxu0 0.0
        %1010 = vmatprep.subr.mxu0 0.0
        %1011 = vmatpush2.msra.mxu0 0.0
        %1012 = vmatprep.subr.mxu0 0.0
        %1013 = vmatpush2.msra.mxu0 0.0
        %1014 = vmatprep.subr.mxu0 0.0
        %1015 = vmatpush2.msra.mxu0 0.0
        %1016 = vmatprep.subr.mxu0 0.0
        %1017 = vmatpush2.msra.mxu0 0.0
        %1018 = vmatprep.subr.mxu0 0.0
        %1019 = vmatpush2.msra.mxu0 0.0
        %1020 = vmatprep.subr.mxu0 0.0
        %1021 = vmatpush2.msra.mxu0 0.0
        %1022 = vmatprep.subr.mxu0 0.0
        %1023 = vmatpush2.msra.mxu0 0.0
        %1024 = vmatprep.subr.mxu0 0.0
        %1025 = vmatpush2.msra.mxu0 0.0
        %1026 = vmatprep.subr.mxu0 0.0
        %1027 = vmatpush2.msra.mxu0 0.0
        %1028 = vmatprep.subr.mxu0 0.0
        %1029 = vmatpush2.msra.mxu0 0.0
        %1030 = vmatprep.subr.mxu0 0.0
        %1031 = vmatpush2.msra.mxu0 0.0
        %1032 = vmatprep.subr.mxu0 0.0
        %1033 = vmatpush2.msra.mxu0 0.0
        %1034 = vmatprep.subr.mxu0 0.0
        %1035 = vmatpush2.msra.mxu0 0.0
        %1036 = vmatprep.subr.mxu0 0.0
        %1037 = vmatpush2.msra.mxu0 0.0
        %1038 = vmatprep.mubr.f32.mxu0 0.0
        %1039 = vmatmul.mubr.f32.gmra.mxu0 %v956
        %v1040 = vpop.f32.mrf.mxu0
        %v1041 = vadd.f32 0.0, %v1040
        %v1042 = vpop.f32.mrf.mxu0
        %1043 = vmatprep.mubr.f32.mxu0 0.0
        %1044 = vmatmul.mubr.f32.gmra.mxu0 %v961
        %v1045 = vpop.f32.mrf.mxu0
        %v1046 = vadd.f32 0.0, %v1045
        %v1047 = vpop.f32.mrf.mxu0
        %1048 = vmatprep.mubr.f32.mxu0 0.0
        %1049 = vmatmul.mubr.f32.gmra.mxu0 %v966
        %v1050 = vpop.f32.mrf.mxu0
        %v1051 = vadd.f32 0.0, %v1050
        %v1052 = vpop.f32.mrf.mxu0
        %1053 = vmatprep.mubr.f32.mxu0 0.0
        %1054 = vmatmul.mubr.f32.gmra.mxu0 %v971
        %v1055 = vpop.f32.mrf.mxu0
        %v1056 = vadd.f32 0.0, %v1055
        %v1057 = vpop.f32.mrf.mxu0
        %1058 = vdwg.mxu0
        %v1059 = vld [vmem:[#allocation5] sm:$0xff]
        %v1060 = vld [vmem:[#allocation5 + $0x8] sm:$0xff]
        %v1061 = vld [vmem:[#allocation5 + $0x10] sm:$0xff]
        %v1062 = vld [vmem:[#allocation5 + $0x18] sm:$0xff]
        %v1064 = vlaneseq
        %v1065 = vshrl.u32 %v1064, 7
        %v1066 = vsub.s32 0, %v1065
        %v1067 = vrot.slane %v768, %v1066
        %v1069 = vmul.f32 %v1067, %v1059
        %v1070 = vmul.f32 %v1067, %v1060
        %v1071 = vmul.f32 %v1067, %v1061
        %v1072 = vmul.f32 %v1067, %v1062
        %v1073 = vadd.f32 %v1069, %v1041
        %v1074 = vadd.f32 %v1070, %v1046
        %v1075 = vadd.f32 %v1071, %v1051
        %v1076 = vadd.f32 %v1072, %v1056
        %1077 = vst [vmem:[#allocation5] sm:$0xff] %v1073
        %1078 = vst [vmem:[#allocation5 + $0x8] sm:$0xff] %v1074
        %1079 = vst [vmem:[#allocation5 + $0x10] sm:$0xff] %v1075
        %1080 = vst [vmem:[#allocation5 + $0x18] sm:$0xff] %v1076
        %p1081 = scmp.eq.s32.totalorder %s35, 1
        // Predicated region
        $region61: #{tpu_custom_call.1} parent=47 // pred_check
          %p1082 = pneg %p1081
        $region62: #{tpu_custom_call.1} parent=47 // pred_check_branch
          %1084 = sbr.rel (%p1082) target = $region64
        $region63: #{tpu_custom_call.1} parent=47 // pred_region
          %v1085 = vld [vmem:[#allocation4] sm:$0x1]
          %v1086 = vrcp.pop %v1085
          %v1087 = vld [vmem:[#allocation5] sm:$0xff]
          %v1088 = vld [vmem:[#allocation5 + $0x8] sm:$0xff]
          %v1089 = vld [vmem:[#allocation5 + $0x10] sm:$0xff]
          %v1090 = vld [vmem:[#allocation5 + $0x18] sm:$0xff]
          %v1092 = vlaneseq
          %v1093 = vshrl.u32 %v1092, 7
          %v1094 = vsub.s32 0, %v1093
          %v1095 = vrot.slane %v1086, %v1094
          %v1097 = vmul.f32 %v1087, %v1095
          %v1098 = vmul.f32 %v1088, %v1095
          %v1099 = vmul.f32 %v1089, %v1095
          %v1100 = vmul.f32 %v1090, %v1095
          %s1101 = sld [smem:[#allocation6]]
          %v1102 = vstv %s1101
          %v1103 = vmul.f32 %v1102, %v1097
          %v1104 = vmul.f32 %v1102, %v1098
          %v1105 = vmul.f32 %v1102, %v1099
          %v1106 = vmul.f32 %v1102, %v1100
          %v1107 = vadd.f32 %v1103, %v365
          %v1108 = vadd.f32 %v1104, %v366
          %v1109 = vadd.f32 %v1105, %v367
          %v1110 = vadd.f32 %v1106, %v368
          %1111 = vst [vmem:[%s364] sm:$0xff] %v1107
          %1112 = vst [vmem:[%s364 + $0x8] sm:$0xff] %v1108
          %1113 = vst [vmem:[%s364 + $0x10] sm:$0xff] %v1109
          %1114 = vst [vmem:[%s364 + $0x18] sm:$0xff] %v1110
        $region64: #{tpu_custom_call.1} parent=47 // pred_fallthru
          _
        %s1115 = sand.u32 %s218, 1
        %s1116 = scalar_lea.sflag [#allocation9], %s1115
        %s1117 = sand.u32 %s218, 1
        %s1118 = smul.addr %s1117, 32
        %s1119 = scalar_lea.vmem [#allocation12], %s1118
        // Predicated region
        $region65: #{tpu_custom_call.1} parent=47 // pred_check
          %p1120 = pneg %p228
        $region66: #{tpu_custom_call.1} parent=47 // pred_check_branch
          %1122 = sbr.rel (%p1120) target = $region68
        $region67: #{tpu_custom_call.1} parent=47 // pred_region
          %s1124 = ssub.s32 512, 512
          %1125 = vsyncadd %s1116, %s1124
          %s1126 = smul.addr %s33, 8
          %s1127 = sadd.s32 %s34, %s1126
          %s1128 = smul.addr %s1127, 128
          %s1129 = scalar_lea.hbm %s7, %s1128
          %s1130 = sshll.u32 %s1119, 4
          %s1131 = int_to_ptr.vmem [resolvable:$true] %s1130
          %1136 = dma.vmem_to_hbm [thread:$0]  %s1131, 512, %s1129, %s1116, 128, 256, 8
        $region68: #{tpu_custom_call.1} parent=47 // pred_fallthru
          _
      $region48: #{tpu_custom_call.1} parent=5 // pred_fallthru
        _
      %p1137 = scmp.le.s32.totalorder 2, %s23
      // Predicated region
      $region69: #{tpu_custom_call.1} parent=5 // pred_check
        %p1138 = pneg %p1137
      $region70: #{tpu_custom_call.1} parent=5 // pred_check_branch
        %1140 = sbr.rel (%p1138) target = $region72
      $region71: #{tpu_custom_call.1} parent=5 // pred_region
        %s1141 = ssub.s32 %s23, 2
        // Predicated region
        $region73: #{tpu_custom_call.1} parent=71 // pred_check
          %p1142 = pneg %p234
        $region74: #{tpu_custom_call.1} parent=71 // pred_check_branch
          %1144 = sbr.rel (%p1142) target = $region76
        $region75: #{tpu_custom_call.1} parent=71 // pred_region
          %s1145 = sand.u32 %s219, 1
          %s1146 = scalar_lea.sflag [#allocation9], %s1145
          %s1147 = sand.u32 %s219, 1
          %s1148 = smul.addr %s1147, 32
          %s1149 = scalar_lea.vmem [#allocation12], %s1148
          %1150 = dma.done %s1146, 512
        $region76: #{tpu_custom_call.1} parent=71 // pred_fallthru
          _
      $region72: #{tpu_custom_call.1} parent=5 // pred_fallthru
        _
    $region6: #{tpu_custom_call.1} parent=1 // loop_footer
      %s27 = sadd.s32 1, %s23
    $region7: #{tpu_custom_call.1} parent=1 // loop_footer_branch
      %22 = sbr.rel target = $region3
    $region8: #{tpu_custom_call.1} parent=1 // loop_exit
      _
    %1151 = vsyncpa [#allocation8], 1
    %s1152 = scalar_lea.sflag [#allocation8], 1
    %1153 = vsyncpa %s1152, 1
    %1154 = vsyncpa [#allocation11], 1
    %s1155 = scalar_lea.sflag [#allocation11], 1
    %1156 = vsyncpa %s1155, 1
    %1157 = vsyncpa [#allocation9], 1
    %s1158 = scalar_lea.sflag [#allocation9], 1
    %1159 = vsyncpa %s1158, 1

</llo_original>
